<compile_context>
chip_gen: v5e
topology: v5e:2x2
jax: 0.10.0
libtpu: 0.0.40
codegen_flags: <defaults>
</compile_context>

<pallas_src>
import jax
import jax.numpy as jnp
from jax.experimental import pallas as pl
from jax.experimental.pallas import tpu as pltpu

LANES = 128


def _round_up(x, m):
    return (x + m - 1) // m * m


def fusion_kernel(fr_ref, fd_ref, w_ref, b_ref, out_ref):
    Bb, L, C = fd_ref.shape

    fr = fr_ref[...]                                   # (Bb, L, C) native dtype
    fd = fd_ref[...]                                   # (Bb, L, C)

    # guide = max over the view dimension (row-independent, so unspecified
    # rows of a ragged tail block cannot contaminate valid rows).
    guide = jnp.max(fr, axis=1)                        # (Bb, C)

    # ---- fused projections (MXU) -------------------------------------------
    # w_ref packs [ wq*scale | wk | wv | w_head ]; static lane-aligned column
    # slices pick the piece each matmul needs.
    q = (jnp.dot(guide, w_ref[:, 0:C], preferred_element_type=jnp.float32)
         + b_ref[:, 0:C].astype(jnp.float32))                        # (Bb, C)

    fd2 = fd.reshape(Bb * L, C)
    kv = (jnp.dot(fd2, w_ref[:, C:3 * C], preferred_element_type=jnp.float32)
          + b_ref[:, C:3 * C].astype(jnp.float32))                   # (Bb*L, 2C)
    k = kv[:, 0:C].reshape(Bb, L, C)
    v = kv[:, C:2 * C].reshape(Bb, L, C)

    # ---- attention pooling (VPU/XLU, keeps MXU free) ------------------------
    # 1/sqrt(C) is already folded into the Q columns of w_ref / b_ref.
    s = jnp.sum(q[:, None, :] * k, axis=-1, keepdims=True)           # (Bb, L, 1)
    s = s - jnp.max(s, axis=1, keepdims=True)
    p = jnp.exp(s)
    p = p * pl.reciprocal(jnp.sum(p, axis=1, keepdims=True), approx=True)
    feat = jnp.sum(p * v, axis=1)                                     # (Bb, C) f32

    # ---- folded regression head (lane-dense store) ---------------------------
    pred = (jnp.dot(feat.astype(w_ref.dtype), w_ref[:, 3 * C:3 * C + LANES],
                    preferred_element_type=jnp.float32)
            + b_ref[:, 3 * C:3 * C + LANES].astype(jnp.float32))      # (Bb, 128)
    out_ref[...] = pred.astype(out_ref.dtype)


def fuse_params(params, dtype=jnp.float32):
    """One-time algebraic folding (pure JAX, outside the kernel).

    All folds are done in f32; cast to `dtype` (e.g. bf16 for v6e/v7x MXU
    operands / halved weight DMA) only at the very end.
    """
    C = params["wq"].shape[0]
    scale = 1.0 / jnp.sqrt(jnp.float32(C))
    wq = params["wq"] * scale                              # fold attention scale
    bq = params["bq"] * scale
    w_head = params["w1"] @ params["w2"]                   # (C, 1)
    b_head = params["b1"] @ params["w2"] + params["b2"]    # (1, 1)
    w_head = jnp.pad(w_head, ((0, 0), (0, LANES - 1)))     # (C, 128) lane-padded
    b_head = jnp.pad(b_head, ((0, 0), (0, LANES - 1)))     # (1, 128)
    w = jnp.concatenate([wq, params["wk"], params["wv"], w_head], axis=1)
    b = jnp.concatenate([bq, params["bk"], params["bv"], b_head], axis=1)
    return {"w": w.astype(dtype), "b": b.astype(dtype)}    # (C,3C+128), (1,3C+128)


def fusion_forward(feats_ref, feats_dist, fused, *, block_b=256):
    """feats_ref / feats_dist: (B, L, C).  Returns (B, 1) predictions.

    block_b tuning: default 256 keeps the double-buffered working set under
    v5e's 16 MiB scoped-VMEM default.  For large B on v6e/v7x raise it (the
    wrapper sets vmem_limit_bytes automatically) and keep B/block_b >= 2 so
    both v7x TensorCores receive grid points via the "parallel" axis.
    """
    B, L, C = feats_ref.shape
    assert C % LANES == 0, "embed_dim must be a multiple of 128"

    # No wrapper-side jnp.pad of the activations (would materialize a full
    # extra HBM copy).  Ragged tail blocks are handled by Pallas: out-of-bounds
    # reads are unspecified but every op is batch-row-independent, and
    # out-of-bounds writes are dropped.
    if block_b >= B:
        block_b = B
    else:
        block_b = _round_up(block_b, 8)
    grid = (pl.cdiv(B, block_b),)

    itemsize = feats_ref.dtype.itemsize
    w_bytes = fused["w"].size * fused["w"].dtype.itemsize
    b_bytes = fused["b"].size * fused["b"].dtype.itemsize

    # Cost hint so XLA can schedule this small kernel off the critical path.
    flops = int(B * (2 * C * C                  # Q projection
                     + L * 2 * C * (2 * C)      # fused K/V projection
                     + 4 * L * C                # scores + weighted pooling
                     + 2 * C * LANES))          # folded head
    cost = pl.CostEstimate(
        flops=flops,
        transcendentals=int(B * (L + 1)),
        bytes_accessed=int(2 * B * L * C * itemsize + w_bytes + b_bytes
                           + B * LANES * 4))

    # VMEM budget: 2 activation inputs + 1 output double-buffered, + weights.
    vmem_need = (2 * 2 * block_b * L * C * itemsize
                 + 2 * block_b * LANES * 4
                 + 2 * (w_bytes + b_bytes))
    compiler_kwargs = dict(dimension_semantics=("parallel",))
    if vmem_need > 12 * 1024 * 1024:
        # Explicit limit with headroom, capped below v7x's 64 MiB physical VMEM.
        compiler_kwargs["vmem_limit_bytes"] = int(min(2 * vmem_need, 60 * 2**20))

    out = pl.pallas_call(
        fusion_kernel,
        out_shape=jax.ShapeDtypeStruct((B, LANES), jnp.float32),
        grid=grid,
        in_specs=[
            pl.BlockSpec((block_b, L, C), lambda i: (i, 0, 0)),    # feats_ref
            pl.BlockSpec((block_b, L, C), lambda i: (i, 0, 0)),    # feats_dist
            pl.BlockSpec((C, 3 * C + LANES), lambda i: (0, 0)),    # fused weight
            pl.BlockSpec((1, 3 * C + LANES), lambda i: (0, 0)),    # fused bias
        ],
        out_specs=pl.BlockSpec((block_b, LANES), lambda i: (i, 0)),
        compiler_params=pltpu.CompilerParams(**compiler_kwargs),
        cost_estimate=cost,
    )(feats_ref, feats_dist, fused["w"], fused["b"])

    return out[:, :1]


def fusion_reference(feats_ref, feats_dist, params):
    """Pure-JAX reference mirroring the original (unfused) module."""
    guide = jnp.max(feats_ref, axis=1)
    q = guide @ params["wq"] + params["bq"]
    k = feats_dist @ params["wk"] + params["bk"]
    v = feats_dist @ params["wv"] + params["bv"]
    C = feats_ref.shape[-1]
    scores = jnp.einsum("bc,blc->bl", q, k) / jnp.sqrt(jnp.float32(C))
    p = jax.nn.softmax(scores, axis=-1)
    feat = jnp.einsum("bl,blc->bc", p, v)
    h = feat @ params["w1"] + params["b1"]
    return h @ params["w2"] + params["b2"]


def init_params(key, embed_dim, hidden_dim):
    ks = jax.random.split(key, 6)
    s_e = 1.0 / jnp.sqrt(jnp.float32(embed_dim))
    s_h = 1.0 / jnp.sqrt(jnp.float32(hidden_dim))
    return {
        "wq": jax.random.normal(ks[0], (embed_dim, embed_dim), jnp.float32) * s_e,
        "bq": jnp.zeros((1, embed_dim), jnp.float32),
        "wk": jax.random.normal(ks[1], (embed_dim, embed_dim), jnp.float32) * s_e,
        "bk": jnp.zeros((1, embed_dim), jnp.float32),
        "wv": jax.random.normal(ks[2], (embed_dim, embed_dim), jnp.float32) * s_e,
        "bv": jnp.zeros((1, embed_dim), jnp.float32),
        "w1": jax.random.normal(ks[3], (embed_dim, hidden_dim), jnp.float32) * s_e,
        "b1": jax.random.normal(ks[4], (1, hidden_dim), jnp.float32) * 0.01,
        "w2": jax.random.normal(ks[5], (hidden_dim, 1), jnp.float32) * s_h,
        "b2": jnp.zeros((1, 1), jnp.float32),
    }


if __name__ == "__main__":
    B, L, C, H = 2, 8, 128, 32   # batch, view_length, embed_dim, hidden_dim
    key = jax.random.PRNGKey(0)
    k_ref, k_dist, k_par = jax.random.split(key, 3)

    feats_ref = jax.random.normal(k_ref, (B, L, C), jnp.float32)
    feats_dist = jax.random.normal(k_dist, (B, L, C), jnp.float32)
    params = init_params(k_par, C, H)
    fused = fuse_params(params)

    pred = fusion_forward(feats_ref, feats_dist, fused)
    pred = jax.block_until_ready(pred)

    ref = fusion_reference(feats_ref, feats_dist, params)
    assert pred.shape == (B, 1)
    # Tolerance is loosened slightly relative to exact math because the kernel
    # uses the EUP approximate reciprocal for the softmax denominator.
    assert jnp.allclose(pred, ref, atol=1e-2, rtol=1e-2), (pred, ref)

    print("KERNEL_OK")
</pallas_src>

<mosaic_0001>
module attributes {stable_mosaic.version = 11 : i64} {
  func.func @fusion_kernel(%arg0: i32, %arg1: memref<2x8x128xf32, #tpu.memory_space<vmem>>, %arg2: memref<2x8x128xf32, #tpu.memory_space<vmem>>, %arg3: memref<128x512xf32, #tpu.memory_space<vmem>>, %arg4: memref<1x512xf32, #tpu.memory_space<vmem>>, %arg5: memref<2x128xf32, #tpu.memory_space<vmem>>) attributes {dimension_semantics = [#tpu.dimension_semantics<parallel>], iteration_bounds = array<i64: 1>, scalar_prefetch = 0 : i64, scratch_operands = 0 : i64, tpu.core_type = #tpu.core_type<tc>, window_params = [{transform_indices = @transform_0, window_bounds = array<i64: 2, 8, 128>}, {transform_indices = @transform_1, window_bounds = array<i64: 2, 8, 128>}, {pipeline_mode = #tpu.pipeline_mode<synchronous>, transform_indices = @transform_2, window_bounds = array<i64: 128, 512>}, {pipeline_mode = #tpu.pipeline_mode<synchronous>, transform_indices = @transform_3, window_bounds = array<i64: 1, 512>}, {transform_indices = @transform_4, window_bounds = array<i64: 2, 128>}]} {
    %c0 = arith.constant 0 : index
    %c0_0 = arith.constant 0 : index
    %c0_1 = arith.constant 0 : index
    %0 = vector.load %arg1[%c0, %c0_0, %c0_1] : memref<2x8x128xf32, #tpu.memory_space<vmem>>, vector<2x8x128xf32>
    %c0_2 = arith.constant 0 : index
    %c0_3 = arith.constant 0 : index
    %c0_4 = arith.constant 0 : index
    %1 = vector.load %arg2[%c0_2, %c0_3, %c0_4] : memref<2x8x128xf32, #tpu.memory_space<vmem>>, vector<2x8x128xf32>
    %cst = arith.constant dense<0xFF800000> : vector<2x128xf32>
    %2 = vector.multi_reduction <maximumf>, %0, %cst [1] : vector<2x8x128xf32> to vector<2x128xf32>
    %c0_5 = arith.constant 0 : index
    %c0_6 = arith.constant 0 : index
    %3 = vector.load %arg3[%c0_5, %c0_6] : memref<128x512xf32, #tpu.memory_space<vmem>>, vector<128x128xf32>
    %cst_7 = arith.constant dense<0.000000e+00> : vector<2x128xf32>
    %4 = tpu.matmul %2, %3, %cst_7 {dimension_numbers = #tpu.dot_dimension_numbers<[1], [0], [0], [1], [0, 0, 1, 1], [], []>} : vector<2x128xf32>, vector<128x128xf32>, vector<2x128xf32> -> vector<2x128xf32>
    %c0_8 = arith.constant 0 : index
    %c0_9 = arith.constant 0 : index
    %5 = vector.load %arg4[%c0_8, %c0_9] : memref<1x512xf32, #tpu.memory_space<vmem>>, vector<1x128xf32>
    %6 = vector.broadcast %5 : vector<1x128xf32> to vector<2x128xf32>
    %7 = arith.addf %4, %6 : vector<2x128xf32>
    %8 = vector.shape_cast %1 : vector<2x8x128xf32> to vector<16x128xf32>
    %c0_10 = arith.constant 0 : index
    %c128 = arith.constant 128 : index
    %9 = vector.load %arg3[%c0_10, %c128] : memref<128x512xf32, #tpu.memory_space<vmem>>, vector<128x256xf32>
    %cst_11 = arith.constant dense<0.000000e+00> : vector<16x256xf32>
    %10 = tpu.matmul %8, %9, %cst_11 {dimension_numbers = #tpu.dot_dimension_numbers<[1], [0], [0], [1], [0, 0, 1, 1], [], []>} : vector<16x128xf32>, vector<128x256xf32>, vector<16x256xf32> -> vector<16x256xf32>
    %c0_12 = arith.constant 0 : index
    %c128_13 = arith.constant 128 : index
    %11 = vector.load %arg4[%c0_12, %c128_13] : memref<1x512xf32, #tpu.memory_space<vmem>>, vector<1x256xf32>
    %12 = vector.broadcast %11 : vector<1x256xf32> to vector<16x256xf32>
    %13 = arith.addf %10, %12 : vector<16x256xf32>
    %14 = vector.extract_strided_slice %13 {offsets = [0, 0], sizes = [16, 128], strides = [1, 1]} : vector<16x256xf32> to vector<16x128xf32>
    %15 = vector.shape_cast %14 : vector<16x128xf32> to vector<2x8x128xf32>
    %16 = vector.extract_strided_slice %13 {offsets = [0, 128], sizes = [16, 128], strides = [1, 1]} : vector<16x256xf32> to vector<16x128xf32>
    %17 = vector.shape_cast %16 : vector<16x128xf32> to vector<2x8x128xf32>
    %18 = vector.shape_cast %7 : vector<2x128xf32> to vector<2x1x128xf32>
    %19 = vector.broadcast %18 : vector<2x1x128xf32> to vector<2x8x128xf32>
    %20 = arith.mulf %19, %15 : vector<2x8x128xf32>
    %cst_14 = arith.constant dense<0.000000e+00> : vector<2x8xf32>
    %21 = vector.multi_reduction <add>, %20, %cst_14 [2] : vector<2x8x128xf32> to vector<2x8xf32>
    %22 = vector.shape_cast %21 : vector<2x8xf32> to vector<2x8x1xf32>
    %cst_15 = arith.constant dense<0xFF800000> : vector<2x1xf32>
    %23 = vector.multi_reduction <maximumf>, %22, %cst_15 [1] : vector<2x8x1xf32> to vector<2x1xf32>
    %24 = vector.shape_cast %23 : vector<2x1xf32> to vector<2x1x1xf32>
    %25 = vector.broadcast %24 : vector<2x1x1xf32> to vector<2x8x1xf32>
    %26 = arith.subf %22, %25 : vector<2x8x1xf32>
    %27 = math.exp %26 : vector<2x8x1xf32>
    %cst_16 = arith.constant dense<0.000000e+00> : vector<2x1xf32>
    %28 = vector.multi_reduction <add>, %27, %cst_16 [1] : vector<2x8x1xf32> to vector<2x1xf32>
    %29 = vector.shape_cast %28 : vector<2x1xf32> to vector<2x1x1xf32>
    %30 = tpu.reciprocal %29 {approx = true} : vector<2x1x1xf32> -> vector<2x1x1xf32>
    %31 = vector.broadcast %30 : vector<2x1x1xf32> to vector<2x8x1xf32>
    %32 = arith.mulf %27, %31 : vector<2x8x1xf32>
    %33 = vector.broadcast %32 : vector<2x8x1xf32> to vector<2x8x128xf32>
    %34 = arith.mulf %33, %17 : vector<2x8x128xf32>
    %cst_17 = arith.constant dense<0.000000e+00> : vector<2x128xf32>
    %35 = vector.multi_reduction <add>, %34, %cst_17 [1] : vector<2x8x128xf32> to vector<2x128xf32>
    %c0_18 = arith.constant 0 : index
    %c384 = arith.constant 384 : index
    %36 = vector.load %arg3[%c0_18, %c384] : memref<128x512xf32, #tpu.memory_space<vmem>>, vector<128x128xf32>
    %cst_19 = arith.constant dense<0.000000e+00> : vector<2x128xf32>
    %37 = tpu.matmul %35, %36, %cst_19 {dimension_numbers = #tpu.dot_dimension_numbers<[1], [0], [0], [1], [0, 0, 1, 1], [], []>} : vector<2x128xf32>, vector<128x128xf32>, vector<2x128xf32> -> vector<2x128xf32>
    %c0_20 = arith.constant 0 : index
    %c384_21 = arith.constant 384 : index
    %38 = vector.load %arg4[%c0_20, %c384_21] : memref<1x512xf32, #tpu.memory_space<vmem>>, vector<1x128xf32>
    %39 = vector.broadcast %38 : vector<1x128xf32> to vector<2x128xf32>
    %40 = arith.addf %37, %39 : vector<2x128xf32>
    %c0_22 = arith.constant 0 : index
    %c0_23 = arith.constant 0 : index
    %41 = vector.load %arg5[%c0_22, %c0_23] : memref<2x128xf32, #tpu.memory_space<vmem>>, vector<2x128xf32>
    tpu.vector_store %arg5[%c0_22, %c0_23], %40 {strides = array<i32>} : memref<2x128xf32, #tpu.memory_space<vmem>>, vector<2x128xf32>,
    return
  }
  func.func @transform_0(%arg0: i32) -> (i32, i32, i32) {
    %c0_i32 = arith.constant 0 : i32
    %c0_i32_0 = arith.constant 0 : i32
    %c0_i32_1 = arith.constant 0 : i32
    return %arg0, %c0_i32, %c0_i32_0 : i32, i32, i32
  }
  func.func @transform_1(%arg0: i32) -> (i32, i32, i32) {
    %c0_i32 = arith.constant 0 : i32
    %c0_i32_0 = arith.constant 0 : i32
    %c0_i32_1 = arith.constant 0 : i32
    return %arg0, %c0_i32, %c0_i32_0 : i32, i32, i32
  }
  func.func @transform_2(%arg0: i32) -> (i32, i32) {
    %c0_i32 = arith.constant 0 : i32
    %c0_i32_0 = arith.constant 0 : i32
    %c0_i32_1 = arith.constant 0 : i32
    return %c0_i32, %c0_i32_0 : i32, i32
  }
  func.func @transform_3(%arg0: i32) -> (i32, i32) {
    %c0_i32 = arith.constant 0 : i32
    %c0_i32_0 = arith.constant 0 : i32
    %c0_i32_1 = arith.constant 0 : i32
    return %c0_i32, %c0_i32_0 : i32, i32
  }
  func.func @transform_4(%arg0: i32) -> (i32, i32) {
    %c0_i32 = arith.constant 0 : i32
    %c0_i32_0 = arith.constant 0 : i32
    return %arg0, %c0_i32 : i32, i32
  }
}

</mosaic_0001>

<llo_original>
// kernel: tpu_custom_call.1
$region0: #{tpu_custom_call.1}
  #allocation0 [shape = 'u32[]', space=smem, size = 0x4, offset = 0x4, fixed_abs, tag = 'smem constant byte address 0x4 - core index']
  #allocation1 [shape = 'u32[72,128]{1,0:T(1,128)}', space=vmem, size = 0x9000, scoped, tag = 'internal scratch']
  %s0 = inlined_call_operand.hbm [shape: f32[2,8,128], index: 0, kind: input, shape index: {}]
  %s1 = inlined_call_operand.hbm [shape: f32[2,8,128], index: 1, kind: input, shape index: {}]
  %s2 = inlined_call_operand.hbm [shape: f32[128,512], index: 2, kind: input, shape index: {}]
  %s3 = inlined_call_operand.hbm [shape: f32[1,512], index: 3, kind: input, shape index: {}]
  %s4 = inlined_call_operand.hbm [shape: f32[2,128], index: 4, kind: output, shape index: {}]
  %s5 = sld [smem:[#allocation0]]
  $region42: #{tpu_custom_call.1} parent=0
    _
  %s7 = ssub.s32 1, %s5
  %s8 = scalar_select 0, %s7, %s5
  $region1: #{tpu_custom_call.1} parent=0
    #allocation2 [shape = 'u8[8192]{0}', space=vmem, size = 0x2000, scoped, tag = 'input window, operand 0, single buffered']
    #allocation3 [shape = 's32[1]{0}', space=sflag, size = 0x4, scoped, tag = 'scoped memory for tpu_custom_call.1']
    #allocation4 [shape = 's32[1]{0}', space=sflag, size = 0x4, scoped, tag = 'scoped memory for tpu_custom_call.1']
    #allocation5 [shape = 'u8[8192]{0}', space=vmem, size = 0x2000, scoped, tag = 'input window, operand 1, single buffered']
    #allocation6 [shape = 's32[1]{0}', space=sflag, size = 0x4, scoped, tag = 'scoped memory for tpu_custom_call.1']
    #allocation7 [shape = 'u8[262144]{0}', space=vmem, size = 0x40000, scoped, tag = 'input window, operand 2, single buffered']
    #allocation8 [shape = 'u8[2048]{0}', space=vmem, size = 0x800, scoped, tag = 'input window, operand 3, single buffered']
    #allocation9 [shape = 's32[1]{0}', space=sflag, size = 0x4, scoped, tag = 'scoped memory for tpu_custom_call.1']
    #allocation10 [shape = 'u8[1024]{0}', space=vmem, size = 0x400, scoped, tag = 'output window, operand 0, single buffered']
    %9 = vsyncpa [#allocation3], 0
    %10 = vsyncpa [#allocation6], 0
    %11 = vsyncpa [#allocation9], 0
    %12 = vsyncpa [#allocation4], 0
    // Predicated region
    $region2: #{tpu_custom_call.1} parent=1 // pred_check
      _
    $region3: #{tpu_custom_call.1} parent=1 // pred_check_branch
      %14 = sbr.rel (0) target = $region5
    $region4: #{tpu_custom_call.1} parent=1 // pred_region
      %16 = vsyncadd [#allocation3], 0
      %s17 = sshll.u32 %s0, 4
      %s18 = int_to_ptr.hbm [resolvable:$true] %s17
      %s19 = sshll.u32 [#allocation2], 4
      %s20 = int_to_ptr.vmem [resolvable:$true] %s19
      %25 = dma.hbm_to_vmem [thread:$0]  %s18, 256, %s20, [#allocation3], 128, 128, 8
    $region5: #{tpu_custom_call.1} parent=1 // pred_fallthru
      _
    // Predicated region
    $region6: #{tpu_custom_call.1} parent=1 // pred_check
      _
    $region7: #{tpu_custom_call.1} parent=1 // pred_check_branch
      %27 = sbr.rel (0) target = $region9
    $region8: #{tpu_custom_call.1} parent=1 // pred_region
      %29 = vsyncadd [#allocation6], 0
      %s30 = sshll.u32 %s1, 4
      %s31 = int_to_ptr.hbm [resolvable:$true] %s30
      %s32 = sshll.u32 [#allocation5], 4
      %s33 = int_to_ptr.vmem [resolvable:$true] %s32
      %38 = dma.hbm_to_vmem [thread:$0]  %s31, 256, %s33, [#allocation6], 128, 128, 8
    $region9: #{tpu_custom_call.1} parent=1 // pred_fallthru
      _
    // Predicated region
    $region10: #{tpu_custom_call.1} parent=1 // pred_check
      _
    $region11: #{tpu_custom_call.1} parent=1 // pred_check_branch
      %40 = sbr.rel (0) target = $region13
    $region12: #{tpu_custom_call.1} parent=1 // pred_region
      %42 = vsyncadd [#allocation6], 0
      %s43 = sshll.u32 %s2, 4
      %s44 = int_to_ptr.hbm [resolvable:$true] %s43
      %s45 = sshll.u32 [#allocation7], 4
      %s46 = int_to_ptr.vmem [resolvable:$true] %s45
      %51 = dma.hbm_to_vmem [thread:$0]  %s44, 8192, %s46, [#allocation6], 512, 512, 32
    $region13: #{tpu_custom_call.1} parent=1 // pred_fallthru
      _
    // Predicated region
    $region14: #{tpu_custom_call.1} parent=1 // pred_check
      _
    $region15: #{tpu_custom_call.1} parent=1 // pred_check_branch
      %53 = sbr.rel (0) target = $region17
    $region16: #{tpu_custom_call.1} parent=1 // pred_region
      %55 = vsyncadd [#allocation9], 0
      %s57 = sshll.u32 %s3, 4
      %s58 = int_to_ptr.hbm [resolvable:$true] %s57
      %s59 = sshll.u32 [#allocation8], 4
      %s60 = int_to_ptr.vmem [resolvable:$true] %s59
      %62 = dma.hbm_to_vmem [thread:$0]  %s58, 64, %s60, [#allocation9]
    $region17: #{tpu_custom_call.1} parent=1 // pred_fallthru
      _
    // Predicated region
    $region18: #{tpu_custom_call.1} parent=1 // pred_check
      _
    $region19: #{tpu_custom_call.1} parent=1 // pred_check_branch
      %64 = sbr.rel (0) target = $region21
    $region20: #{tpu_custom_call.1} parent=1 // pred_region
      %66 = dma.done [#allocation3], 256
    $region21: #{tpu_custom_call.1} parent=1 // pred_fallthru
      _
    // Predicated region
    $region22: #{tpu_custom_call.1} parent=1 // pred_check
      _
    $region23: #{tpu_custom_call.1} parent=1 // pred_check_branch
      %68 = sbr.rel (0) target = $region25
    $region24: #{tpu_custom_call.1} parent=1 // pred_region
      %70 = dma.done [#allocation6], 256
    $region25: #{tpu_custom_call.1} parent=1 // pred_fallthru
      _
    // Predicated region
    $region26: #{tpu_custom_call.1} parent=1 // pred_check
      _
    $region27: #{tpu_custom_call.1} parent=1 // pred_check_branch
      %72 = sbr.rel (0) target = $region29
    $region28: #{tpu_custom_call.1} parent=1 // pred_region
      %74 = dma.done [#allocation6], 8192
    $region29: #{tpu_custom_call.1} parent=1 // pred_fallthru
      _
    // Predicated region
    $region30: #{tpu_custom_call.1} parent=1 // pred_check
      _
    $region31: #{tpu_custom_call.1} parent=1 // pred_check_branch
      %76 = sbr.rel (0) target = $region33
    $region32: #{tpu_custom_call.1} parent=1 // pred_region
      %78 = dma.done [#allocation9], 64
    $region33: #{tpu_custom_call.1} parent=1 // pred_fallthru
      _
    %v79 = vld [vmem:[#allocation2] sm:$0xff]
    %v80 = vld [vmem:[#allocation2 + $0x8] sm:$0xff]
    %v81 = vld [vmem:[#allocation5] sm:$0xff]
    %v82 = vld [vmem:[#allocation5 + $0x8] sm:$0xff]
    %v83 = vrot.slane %v79, 4
    %v84 = vmax.f32 %v79, %v83
    %v85 = vrot.slane %v84, 2
    %v86 = vmax.f32 %v84, %v85
    %v87 = vrot.slane %v86, 1
    %v88 = vmax.f32 %v86, %v87
    %v89 = vrot.slane %v80, 4
    %v90 = vmax.f32 %v80, %v89
    %v91 = vrot.slane %v90, 2
    %v92 = vmax.f32 %v90, %v91
    %v93 = vrot.slane %v92, 1
    %v94 = vmax.f32 %v92, %v93
    %v95 = vld [vmem:[#allocation7] sm:$0xff]
    %v96 = vld [vmem:[#allocation7 + $0x20] sm:$0xff]
    %v97 = vld [vmem:[#allocation7 + $0x40] sm:$0xff]
    %v98 = vld [vmem:[#allocation7 + $0x60] sm:$0xff]
    %v99 = vld [vmem:[#allocation7 + $0x80] sm:$0xff]
    %v100 = vld [vmem:[#allocation7 + $0xa0] sm:$0xff]
    %v101 = vld [vmem:[#allocation7 + $0xc0] sm:$0xff]
    %v102 = vld [vmem:[#allocation7 + $0xe0] sm:$0xff]
    %v103 = vld [vmem:[#allocation7 + $0x100] sm:$0xff]
    %v104 = vld [vmem:[#allocation7 + $0x120] sm:$0xff]
    %v105 = vld [vmem:[#allocation7 + $0x140] sm:$0xff]
    %v106 = vld [vmem:[#allocation7 + $0x160] sm:$0xff]
    %v107 = vld [vmem:[#allocation7 + $0x180] sm:$0xff]
    %v108 = vld [vmem:[#allocation7 + $0x1a0] sm:$0xff]
    %v109 = vld [vmem:[#allocation7 + $0x1c0] sm:$0xff]
    %v110 = vld [vmem:[#allocation7 + $0x1e0] sm:$0xff]
    %v111 = vld [vmem:[#allocation8] sm:$0x1]
    %v113 = vperm.slane %v111, 0
    %vm117 = vcmask 1041409
    %v118 = vsel %vm117, %v94, %v88
    %120 = vmatpush.msra.mxu0 %v110
    %121 = vmatpush.msra.mxu0 %v109
    %122 = vmatpush.msra.mxu0 %v108
    %123 = vmatpush.msra.mxu0 %v107
    %124 = vmatpush.msra.mxu0 %v106
    %125 = vmatpush.msra.mxu0 %v105
    %126 = vmatpush.msra.mxu0 %v104
    %127 = vmatpush.msra.mxu0 %v103
    %128 = vmatpush.msra.mxu0 %v102
    %129 = vmatpush.msra.mxu0 %v101
    %130 = vmatpush.msra.mxu0 %v100
    %131 = vmatpush.msra.mxu0 %v99
    %132 = vmatpush.msra.mxu0 %v98
    %133 = vmatpush.msra.mxu0 %v97
    %134 = vmatpush.msra.mxu0 %v96
    %135 = vmatpush.msra.mxu0 %v95
    %136 = vmatmul.f32.gmra.mxu0 %v118
    %v137 = vpop.f32.mrf.mxu0
    %v138 = vadd.f32 %v113, %v137
    %139 = vdwg.mxu0
    %v140 = vld [vmem:[#allocation7 + $0x8] sm:$0xff]
    %v141 = vld [vmem:[#allocation7 + $0x10] sm:$0xff]
    %v142 = vld [vmem:[#allocation7 + $0x28] sm:$0xff]
    %v143 = vld [vmem:[#allocation7 + $0x30] sm:$0xff]
    %v144 = vld [vmem:[#allocation7 + $0x48] sm:$0xff]
    %v145 = vld [vmem:[#allocation7 + $0x50] sm:$0xff]
    %v146 = vld [vmem:[#allocation7 + $0x68] sm:$0xff]
    %v147 = vld [vmem:[#allocation7 + $0x70] sm:$0xff]
    %v148 = vld [vmem:[#allocation7 + $0x88] sm:$0xff]
    %v149 = vld [vmem:[#allocation7 + $0x90] sm:$0xff]
    %v150 = vld [vmem:[#allocation7 + $0xa8] sm:$0xff]
    %v151 = vld [vmem:[#allocation7 + $0xb0] sm:$0xff]
    %v152 = vld [vmem:[#allocation7 + $0xc8] sm:$0xff]
    %v153 = vld [vmem:[#allocation7 + $0xd0] sm:$0xff]
    %v154 = vld [vmem:[#allocation7 + $0xe8] sm:$0xff]
    %v155 = vld [vmem:[#allocation7 + $0xf0] sm:$0xff]
    %v156 = vld [vmem:[#allocation7 + $0x108] sm:$0xff]
    %v157 = vld [vmem:[#allocation7 + $0x110] sm:$0xff]
    %v158 = vld [vmem:[#allocation7 + $0x128] sm:$0xff]
    %v159 = vld [vmem:[#allocation7 + $0x130] sm:$0xff]
    %v160 = vld [vmem:[#allocation7 + $0x148] sm:$0xff]
    %v161 = vld [vmem:[#allocation7 + $0x150] sm:$0xff]
    %v162 = vld [vmem:[#allocation7 + $0x168] sm:$0xff]
    %v163 = vld [vmem:[#allocation7 + $0x170] sm:$0xff]
    %v164 = vld [vmem:[#allocation7 + $0x188] sm:$0xff]
    %v165 = vld [vmem:[#allocation7 + $0x190] sm:$0xff]
    %v166 = vld [vmem:[#allocation7 + $0x1a8] sm:$0xff]
    %v167 = vld [vmem:[#allocation7 + $0x1b0] sm:$0xff]
    %v168 = vld [vmem:[#allocation7 + $0x1c8] sm:$0xff]
    %v169 = vld [vmem:[#allocation7 + $0x1d0] sm:$0xff]
    %v170 = vld [vmem:[#allocation7 + $0x1e8] sm:$0xff]
    %v171 = vld [vmem:[#allocation7 + $0x1f0] sm:$0xff]
    %v172 = vld [vmem:[#allocation8 + $0x1] sm:$0x3]
    %v174 = vperm.slane %v172, 0
    %v175 = vperm.slane %v172, 1
    %178 = vmatpush.msra.mxu0 %v170
    %179 = vmatpush.msra.mxu0 %v168
    %180 = vmatpush.msra.mxu0 %v166
    %181 = vmatpush.msra.mxu0 %v164
    %182 = vmatpush.msra.mxu0 %v162
    %183 = vmatpush.msra.mxu0 %v160
    %184 = vmatpush.msra.mxu0 %v158
    %185 = vmatpush.msra.mxu0 %v156
    %186 = vmatpush.msra.mxu0 %v154
    %187 = vmatpush.msra.mxu0 %v152
    %188 = vmatpush.msra.mxu0 %v150
    %189 = vmatpush.msra.mxu0 %v148
    %190 = vmatpush.msra.mxu0 %v146
    %191 = vmatpush.msra.mxu0 %v144
    %192 = vmatpush.msra.mxu0 %v142
    %193 = vmatpush.msra.mxu0 %v140
    %194 = vmatmul.f32.gmra.mxu0 %v81
    %v195 = vpop.f32.mrf.mxu0
    %v196 = vadd.f32 %v174, %v195
    %197 = vmatmul.f32.gmra.mxu0 %v82
    %v198 = vpop.f32.mrf.mxu0
    %v199 = vadd.f32 %v174, %v198
    %200 = vdwg.mxu0
    %201 = vmatpush.msra.mxu0 %v171
    %202 = vmatpush.msra.mxu0 %v169
    %203 = vmatpush.msra.mxu0 %v167
    %204 = vmatpush.msra.mxu0 %v165
    %205 = vmatpush.msra.mxu0 %v163
    %206 = vmatpush.msra.mxu0 %v161
    %207 = vmatpush.msra.mxu0 %v159
    %208 = vmatpush.msra.mxu0 %v157
    %209 = vmatpush.msra.mxu0 %v155
    %210 = vmatpush.msra.mxu0 %v153
    %211 = vmatpush.msra.mxu0 %v151
    %212 = vmatpush.msra.mxu0 %v149
    %213 = vmatpush.msra.mxu0 %v147
    %214 = vmatpush.msra.mxu0 %v145
    %215 = vmatpush.msra.mxu0 %v143
    %216 = vmatpush.msra.mxu0 %v141
    %217 = vmatmul.f32.gmra.mxu0 %v81
    %v218 = vpop.f32.mrf.mxu0
    %v219 = vadd.f32 %v175, %v218
    %220 = vmatmul.f32.gmra.mxu0 %v82
    %v221 = vpop.f32.mrf.mxu0
    %v222 = vadd.f32 %v175, %v221
    %223 = vdwg.mxu0
    %v225 = vrot.slane %v138, 1
    %v226 = vperm.slane %v138, 0
    %v227 = vperm.slane %v225, 0
    %v230 = vmul.f32 %v226, %v196
    %v231 = vmul.f32 %v227, %v199
    %232 = vadd.xlane.f32.xlu0 %v230
    %v233 = vpop.xlane.xlu0 %232
    %234 = vadd.xlane.f32.xlu0 %v231
    %v235 = vpop.xlane.xlu0 %234
    %v236 = vrot.slane %v233, 4
    %v237 = vmax.f32 %v233, %v236
    %v238 = vrot.slane %v237, 2
    %v239 = vmax.f32 %v237, %v238
    %v240 = vrot.slane %v239, 1
    %v241 = vmax.f32 %v239, %v240
    %v242 = vrot.slane %v235, 4
    %v243 = vmax.f32 %v235, %v242
    %v244 = vrot.slane %v243, 2
    %v245 = vmax.f32 %v243, %v244
    %v246 = vrot.slane %v245, 1
    %v247 = vmax.f32 %v245, %v246
    %v248 = vsub.f32 %v233, %v241
    %v249 = vsub.f32 %v235, %v247
    %v250 = vmul.f32 %v248, 1.442695
    %v251 = vpow.pop %v250
    %v252 = vmul.f32 %v249, 1.442695
    %v253 = vpow.pop %v252
    %v254 = vrot.slane %v251, 4
    %v255 = vadd.f32 %v251, %v254
    %v256 = vrot.slane %v255, 2
    %v257 = vadd.f32 %v255, %v256
    %v258 = vrot.slane %v257, 1
    %v259 = vadd.f32 %v257, %v258
    %v260 = vrot.slane %v253, 4
    %v261 = vadd.f32 %v253, %v260
    %v262 = vrot.slane %v261, 2
    %v263 = vadd.f32 %v261, %v262
    %v264 = vrot.slane %v263, 1
    %v265 = vadd.f32 %v263, %v264
    %v266 = vrcp.pop %v259
    %v267 = vrcp.pop %v265
    %v268 = vmul.f32 %v251, %v266
    %v269 = vmul.f32 %v253, %v267
    %v270 = vmul.f32 %v268, %v219
    %v271 = vmul.f32 %v269, %v222
    %v272 = vrot.slane %v270, 4
    %v273 = vadd.f32 %v270, %v272
    %v274 = vrot.slane %v273, 2
    %v275 = vadd.f32 %v273, %v274
    %v276 = vrot.slane %v275, 1
    %v277 = vadd.f32 %v275, %v276
    %v278 = vrot.slane %v271, 4
    %v279 = vadd.f32 %v271, %v278
    %v280 = vrot.slane %v279, 2
    %v281 = vadd.f32 %v279, %v280
    %v282 = vrot.slane %v281, 1
    %v283 = vadd.f32 %v281, %v282
    %v284 = vld [vmem:[#allocation7 + $0x18] sm:$0xff]
    %v285 = vld [vmem:[#allocation7 + $0x38] sm:$0xff]
    %v286 = vld [vmem:[#allocation7 + $0x58] sm:$0xff]
    %v287 = vld [vmem:[#allocation7 + $0x78] sm:$0xff]
    %v288 = vld [vmem:[#allocation7 + $0x98] sm:$0xff]
    %v289 = vld [vmem:[#allocation7 + $0xb8] sm:$0xff]
    %v290 = vld [vmem:[#allocation7 + $0xd8] sm:$0xff]
    %v291 = vld [vmem:[#allocation7 + $0xf8] sm:$0xff]
    %v292 = vld [vmem:[#allocation7 + $0x118] sm:$0xff]
    %v293 = vld [vmem:[#allocation7 + $0x138] sm:$0xff]
    %v294 = vld [vmem:[#allocation7 + $0x158] sm:$0xff]
    %v295 = vld [vmem:[#allocation7 + $0x178] sm:$0xff]
    %v296 = vld [vmem:[#allocation7 + $0x198] sm:$0xff]
    %v297 = vld [vmem:[#allocation7 + $0x1b8] sm:$0xff]
    %v298 = vld [vmem:[#allocation7 + $0x1d8] sm:$0xff]
    %v299 = vld [vmem:[#allocation7 + $0x1f8] sm:$0xff]
    %v300 = vld [vmem:[#allocation8 + $0x3] sm:$0x1]
    %v302 = vperm.slane %v300, 0
    %v306 = vsel %vm117, %v283, %v277
    %308 = vmatpush.msra.mxu0 %v299
    %309 = vmatpush.msra.mxu0 %v298
    %310 = vmatpush.msra.mxu0 %v297
    %311 = vmatpush.msra.mxu0 %v296
    %312 = vmatpush.msra.mxu0 %v295
    %313 = vmatpush.msra.mxu0 %v294
    %314 = vmatpush.msra.mxu0 %v293
    %315 = vmatpush.msra.mxu0 %v292
    %316 = vmatpush.msra.mxu0 %v291
    %317 = vmatpush.msra.mxu0 %v290
    %318 = vmatpush.msra.mxu0 %v289
    %319 = vmatpush.msra.mxu0 %v288
    %320 = vmatpush.msra.mxu0 %v287
    %321 = vmatpush.msra.mxu0 %v286
    %322 = vmatpush.msra.mxu0 %v285
    %323 = vmatpush.msra.mxu0 %v284
    %324 = vmatmul.f32.gmra.mxu0 %v306
    %v325 = vpop.f32.mrf.mxu0
    %v326 = vadd.f32 %v302, %v325
    %327 = vdwg.mxu0
    %328 = vst [vmem:[#allocation10] sm:$0x3] %v326
    // Predicated region
    $region34: #{tpu_custom_call.1} parent=1 // pred_check
      _
    $region35: #{tpu_custom_call.1} parent=1 // pred_check_branch
      %330 = sbr.rel (0) target = $region37
    $region36: #{tpu_custom_call.1} parent=1 // pred_region
      %332 = vsyncadd [#allocation4], 0
      %s334 = sshll.u32 [#allocation10], 4
      %s335 = int_to_ptr.vmem [resolvable:$true] %s334
      %s336 = sshll.u32 %s4, 4
      %s337 = int_to_ptr.hbm [resolvable:$true] %s336
      %339 = dma.vmem_to_hbm [thread:$0]  %s335, 32, %s337, [#allocation4]
    $region37: #{tpu_custom_call.1} parent=1 // pred_fallthru
      _
    // Predicated region
    $region38: #{tpu_custom_call.1} parent=1 // pred_check
      _
    $region39: #{tpu_custom_call.1} parent=1 // pred_check_branch
      %341 = sbr.rel (0) target = $region41
    $region40: #{tpu_custom_call.1} parent=1 // pred_region
      %343 = dma.done [#allocation4], 32
    $region41: #{tpu_custom_call.1} parent=1 // pred_fallthru
      _
    %344 = vsyncpa [#allocation3], 1
    %345 = vsyncpa [#allocation6], 1
    %346 = vsyncpa [#allocation9], 1
    %347 = vsyncpa [#allocation4], 1

</llo_original>
